<compile_context>
chip_gen: v7x
topology: tpu7x:2x2x1
jax: 0.10.0
libtpu: 0.0.40
codegen_flags: <defaults>
</compile_context>

<pallas_src>
import jax
import jax.numpy as jnp
from jax.experimental import pallas as pl
from jax.experimental.pallas import tpu as pltpu


def _attention_encoder_kernel(x_ref, mask_ref, u_ref, c_ref, out_ref):
    x = x_ref[...].astype(jnp.float32)        # (TB, S, D)
    mask = mask_ref[...].astype(jnp.float32)  # (TB, S)
    u = u_ref[...]                            # (D, 1)  f32 = W^T @ att_vec
    c = c_ref[0, 0]                           # scalar  f32 = att_fc_b . att_vec

    TB, S, D = x.shape

    # att_scores = x @ (W^T v) + b.v   (exact fold of Linear + att_vec reduce; MXU)
    scores = jnp.dot(x.reshape(TB * S, D), u,
                     preferred_element_type=jnp.float32).reshape(TB, S) + c

    # softmax(scores * mask) -> square -> renormalize fuses exactly to
    #   exp(2*(masked - m)) / sum(exp(2*(masked - m)))
    masked = scores * mask                                    # module multiplies by mask
    m = jnp.max(masked, axis=1, keepdims=True)
    e2 = jnp.exp(2.0 * (masked - m))
    w = e2 / jnp.sum(e2, axis=1, keepdims=True)

    # encoded = sum_s w[b, s] * x[b, s, :]
    encoded = jnp.sum(x * w[:, :, None], axis=1)
    out_ref[...] = encoded.astype(out_ref.dtype)


def simple_attention_encoder(inputs, mask, att_fc_w, att_fc_b, att_vec,
                             *, block_b=None):
    """inputs: (B, S, D), mask: (B, S), att_fc_w: (A, D), att_fc_b: (A,),
    att_vec: (A,). Returns (B, D) float32."""
    B, S, D = inputs.shape
    x_bytes = inputs.dtype.itemsize
    m_bytes = mask.dtype.itemsize

    # --- fold attention vector into the linear layer (exact algebra) ---------
    w32 = jnp.asarray(att_fc_w, jnp.float32)
    b32 = jnp.asarray(att_fc_b, jnp.float32)
    v32 = jnp.asarray(att_vec, jnp.float32)
    u = (v32 @ w32).reshape(D, 1)                 # (D, 1) = W^T v (no in-kernel T)
    c = jnp.dot(b32, v32).reshape(1, 1)           # scalar b.v, lives in SMEM

    # --- batch tiling: largest tile fitting a ~32 MiB VMEM budget -------------
    # Per batch row: double-buffered x + mask DMA, plus f32 working copies
    # (upcast x, weighted product, weights) and the f32 output row.
    per_row = (S * D * (2 * x_bytes + 3 * 4)
               + S * (2 * m_bytes + 3 * 4)
               + D * 3 * 4)
    if block_b is None:
        budget = 32 * 1024 * 1024
        block_b = max(1, budget // max(per_row, 1))
        block_b = min(block_b, B, 1024)
    if block_b >= B:
        block_b = B
    else:
        block_b = max(8, (block_b // 8) * 8)      # sublane constraint when tiled
    num_blocks = -(-B // block_b)
    Bp = num_blocks * block_b

    x, msk = inputs, mask
    if Bp != B:
        # zero padding is safe: padded rows produce finite weights and encode to 0
        x = jnp.pad(x, ((0, Bp - B), (0, 0), (0, 0)))
        msk = jnp.pad(msk, ((0, Bp - B), (0, 0)))

    vmem_need = block_b * per_row + D * 4 + 4096
    vmem_limit = int(min(64 * 1024 * 1024,
                         max(32 * 1024 * 1024, (5 * vmem_need) // 4)))

    out = pl.pallas_call(
        _attention_encoder_kernel,
        out_shape=jax.ShapeDtypeStruct((Bp, D), jnp.float32),
        grid=(num_blocks,),
        in_specs=[
            pl.BlockSpec((block_b, S, D), lambda i: (i, 0, 0)),      # x tile
            pl.BlockSpec((block_b, S), lambda i: (i, 0)),            # mask tile
            pl.BlockSpec((D, 1), lambda i: (0, 0)),                  # u (replicated)
            pl.BlockSpec(memory_space=pltpu.MemorySpace.SMEM),       # c scalar
        ],
        out_specs=pl.BlockSpec((block_b, D), lambda i: (i, 0)),
        compiler_params=pltpu.CompilerParams(
            dimension_semantics=("parallel",),
            vmem_limit_bytes=vmem_limit),
        cost_estimate=pl.CostEstimate(
            flops=int(4 * Bp * S * D + 8 * Bp * S),
            transcendentals=int(Bp * S),
            bytes_accessed=int(Bp * S * D * x_bytes + Bp * S * m_bytes
                               + Bp * D * 4 + D * 4 + 4)),
    )(x, msk, u, c)

    return out[:B] if Bp != B else out


def _reference(inputs, mask, att_fc_w, att_fc_b, att_vec):
    wx_plus_b = inputs @ att_fc_w.T + att_fc_b
    att_scores = jnp.sum(wx_plus_b * att_vec, axis=-1)
    att_weights = jax.nn.softmax(att_scores * mask, axis=1)
    att_weights = att_weights * att_weights
    att_weights = att_weights / jnp.sum(att_weights, axis=1, keepdims=True)
    return jnp.sum(inputs * att_weights[:, :, None], axis=1)


if __name__ == "__main__":
    # Small shapes consistent with the module: batch=2, seq=8, input_size=32,
    # attention_size=16.
    B, S, D, A = 2, 8, 32, 16
    key = jax.random.PRNGKey(0)
    k_x, k_m, k_w, k_b, k_v = jax.random.split(key, 5)

    inputs = jax.random.normal(k_x, (B, S, D), dtype=jnp.float32)
    # Binary mask (1 = keep). The module multiplies scores by the mask
    # (it does not add -inf); we reproduce exactly that semantics.
    # TODO(synk): confirm with the module author whether multiplicative masking
    # (rather than -inf masking) is intended.
    mask = (jax.random.uniform(k_m, (B, S)) > 0.25).astype(jnp.float32)

    # Deterministic parameter init (same shapes as nn.Linear(D, A) + att_vec).
    bound = 1.0 / jnp.sqrt(jnp.float32(D))
    att_fc_w = jax.random.uniform(k_w, (A, D), minval=-bound, maxval=bound,
                                  dtype=jnp.float32)
    att_fc_b = jax.random.uniform(k_b, (A,), minval=-bound, maxval=bound,
                                  dtype=jnp.float32)
    att_vec = jax.random.uniform(k_v, (A,), dtype=jnp.float32)  # torch.rand

    out = simple_attention_encoder(inputs, mask, att_fc_w, att_fc_b, att_vec)
    out = jax.block_until_ready(out)

    ref = _reference(inputs, mask, att_fc_w, att_fc_b, att_vec)
    assert out.shape == (B, D)
    assert jnp.allclose(out, ref, atol=1e-5, rtol=1e-5)

    print("KERNEL_OK")
</pallas_src>

<mosaic_0001>
module attributes {stable_mosaic.version = 11 : i64} {
  func.func @_attention_encoder_kernel(%arg0: i32, %arg1: memref<2x8x32xf32, #tpu.memory_space<vmem>>, %arg2: memref<2x8xf32, #tpu.memory_space<vmem>>, %arg3: memref<32x1xf32, #tpu.memory_space<vmem>>, %arg4: memref<1x1xf32, #tpu.memory_space<smem>>, %arg5: memref<2x32xf32, #tpu.memory_space<vmem>>) attributes {dimension_semantics = [#tpu.dimension_semantics<parallel>], iteration_bounds = array<i64: 1>, scalar_prefetch = 0 : i64, scratch_operands = 0 : i64, tpu.core_type = #tpu.core_type<tc>, window_params = [{transform_indices = @transform_0, window_bounds = array<i64: 2, 8, 32>}, {transform_indices = @transform_1, window_bounds = array<i64: 2, 8>}, {pipeline_mode = #tpu.pipeline_mode<synchronous>, transform_indices = @transform_2, window_bounds = array<i64: 32, 1>}, {transform_indices = @transform_3, window_bounds = array<i64: 1, 1>}, {transform_indices = @transform_4, window_bounds = array<i64: 2, 32>}]} {
    %c0 = arith.constant 0 : index
    %c0_0 = arith.constant 0 : index
    %c0_1 = arith.constant 0 : index
    %0 = vector.load %arg1[%c0, %c0_0, %c0_1] : memref<2x8x32xf32, #tpu.memory_space<vmem>>, vector<2x8x32xf32>
    %c0_2 = arith.constant 0 : index
    %c0_3 = arith.constant 0 : index
    %1 = vector.load %arg2[%c0_2, %c0_3] : memref<2x8xf32, #tpu.memory_space<vmem>>, vector<2x8xf32>
    %c0_4 = arith.constant 0 : index
    %c0_5 = arith.constant 0 : index
    %2 = vector.load %arg3[%c0_4, %c0_5] : memref<32x1xf32, #tpu.memory_space<vmem>>, vector<32x1xf32>
    %c0_6 = arith.constant 0 : index
    %c0_7 = arith.constant 0 : index
    %3 = memref.load %arg4[%c0_6, %c0_7] : memref<1x1xf32, #tpu.memory_space<smem>>
    %4 = vector.shape_cast %0 : vector<2x8x32xf32> to vector<16x32xf32>
    %cst = arith.constant dense<0.000000e+00> : vector<16x1xf32>
    %5 = tpu.matmul %4, %2, %cst {dimension_numbers = #tpu.dot_dimension_numbers<[1], [0], [0], [1], [0, 0, 1, 1], [], []>} : vector<16x32xf32>, vector<32x1xf32>, vector<16x1xf32> -> vector<16x1xf32>
    %6 = vector.shape_cast %5 : vector<16x1xf32> to vector<2x8xf32>
    %7 = vector.broadcast %3 : f32 to vector<2x8xf32>
    %8 = arith.addf %6, %7 : vector<2x8xf32>
    %9 = arith.mulf %8, %1 : vector<2x8xf32>
    %cst_8 = arith.constant dense<0xFF800000> : vector<2xf32>
    %10 = vector.multi_reduction <maximumf>, %9, %cst_8 [1] : vector<2x8xf32> to vector<2xf32>
    %11 = vector.shape_cast %10 : vector<2xf32> to vector<2x1xf32>
    %12 = vector.broadcast %11 : vector<2x1xf32> to vector<2x8xf32>
    %13 = arith.subf %9, %12 : vector<2x8xf32>
    %cst_9 = arith.constant 2.000000e+00 : f32
    %14 = vector.broadcast %cst_9 : f32 to vector<2x8xf32>
    %15 = arith.mulf %14, %13 : vector<2x8xf32>
    %16 = math.exp %15 : vector<2x8xf32>
    %cst_10 = arith.constant dense<0.000000e+00> : vector<2xf32>
    %17 = vector.multi_reduction <add>, %16, %cst_10 [1] : vector<2x8xf32> to vector<2xf32>
    %18 = vector.shape_cast %17 : vector<2xf32> to vector<2x1xf32>
    %19 = vector.broadcast %18 : vector<2x1xf32> to vector<2x8xf32>
    %20 = arith.divf %16, %19 : vector<2x8xf32>
    %21 = vector.shape_cast %20 : vector<2x8xf32> to vector<2x8x1xf32>
    %22 = vector.broadcast %21 : vector<2x8x1xf32> to vector<2x8x32xf32>
    %23 = arith.mulf %0, %22 : vector<2x8x32xf32>
    %cst_11 = arith.constant dense<0.000000e+00> : vector<2x32xf32>
    %24 = vector.multi_reduction <add>, %23, %cst_11 [1] : vector<2x8x32xf32> to vector<2x32xf32>
    %c0_12 = arith.constant 0 : index
    %c0_13 = arith.constant 0 : index
    %25 = vector.load %arg5[%c0_12, %c0_13] : memref<2x32xf32, #tpu.memory_space<vmem>>, vector<2x32xf32>
    tpu.vector_store %arg5[%c0_12, %c0_13], %24 {strides = array<i32>} : memref<2x32xf32, #tpu.memory_space<vmem>>, vector<2x32xf32>,
    return
  }
  func.func @transform_0(%arg0: i32) -> (i32, i32, i32) {
    %c0_i32 = arith.constant 0 : i32
    %c0_i32_0 = arith.constant 0 : i32
    %c0_i32_1 = arith.constant 0 : i32
    return %arg0, %c0_i32, %c0_i32_0 : i32, i32, i32
  }
  func.func @transform_1(%arg0: i32) -> (i32, i32) {
    %c0_i32 = arith.constant 0 : i32
    %c0_i32_0 = arith.constant 0 : i32
    return %arg0, %c0_i32 : i32, i32
  }
  func.func @transform_2(%arg0: i32) -> (i32, i32) {
    %c0_i32 = arith.constant 0 : i32
    %c0_i32_0 = arith.constant 0 : i32
    %c0_i32_1 = arith.constant 0 : i32
    return %c0_i32, %c0_i32_0 : i32, i32
  }
  func.func @transform_3(%arg0: i32) -> (i32, i32) {
    %c0_i32 = arith.constant 0 : i32
    %c0_i32_0 = arith.constant 0 : i32
    %c0_i32_1 = arith.constant 0 : i32
    return %c0_i32, %c0_i32_0 : i32, i32
  }
  func.func @transform_4(%arg0: i32) -> (i32, i32) {
    %c0_i32 = arith.constant 0 : i32
    %c0_i32_0 = arith.constant 0 : i32
    return %arg0, %c0_i32 : i32, i32
  }
}

</mosaic_0001>

<llo_original>
// kernel: tpu_custom_call.1
$region0: #{tpu_custom_call.1}
  #allocation0 [shape = 'u32[]', space=smem, size = 0x4, offset = 0x4, fixed_abs, tag = 'smem constant byte address 0x4 - core index']
  #allocation1 [shape = 'u32[144,128]{1,0:T(1,128)}', space=vmem, size = 0x12000, scoped, tag = 'internal scratch']
  #allocation2 [shape = 'f32[1,1]{1,0:T(1,128)S(6)}', space=smem, size = 0x200, scoped, tag = 'scoped memory for tpu_custom_call.1']
  %s0 = inlined_call_operand.vmem [shape: f32[2,8,32], index: 0, kind: input, shape index: {}]
  %s1 = inlined_call_operand.vmem [shape: f32[2,8], index: 1, kind: input, shape index: {}]
  %s2 = inlined_call_operand.vmem [shape: f32[32,1], index: 2, kind: input, shape index: {}]
  %s3 = inlined_call_operand.<no memory space> [shape: f32[1,1], index: 3, kind: input, shape index: {}]
  %s4 = inlined_call_operand.hbm [shape: f32[2,32], index: 4, kind: output, shape index: {}]
  %s5 = sld [smem:[#allocation0]]
  $region26: #{tpu_custom_call.1} parent=0
    _
  %s7 = ssub.s32 1, %s5
  %s8 = scalar_select 0, %s7, %s5
  %9 = sst [smem:[#allocation2]] %s3
  $region1: #{tpu_custom_call.1} parent=0
    #allocation3 [shape = 'u8[1024]{0}', space=vmem, size = 0x400, scoped, tag = 'output window, operand 0, single buffered']
    #allocation4 [shape = 's32[1]{0}', space=sflag, size = 0x4, scoped, tag = 'scoped memory for tpu_custom_call.1']
    %10 = vsyncpa [#allocation4], 0
    // Predicated region
    $region2: #{tpu_custom_call.1} parent=1 // pred_check
      _
    $region3: #{tpu_custom_call.1} parent=1 // pred_check_branch
      %12 = sbr.rel (0) target = $region5
    $region4: #{tpu_custom_call.1} parent=1 // pred_region
      _
    $region5: #{tpu_custom_call.1} parent=1 // pred_fallthru
      _
    // Predicated region
    $region6: #{tpu_custom_call.1} parent=1 // pred_check
      _
    $region7: #{tpu_custom_call.1} parent=1 // pred_check_branch
      %14 = sbr.rel (0) target = $region9
    $region8: #{tpu_custom_call.1} parent=1 // pred_region
      _
    $region9: #{tpu_custom_call.1} parent=1 // pred_fallthru
      _
    // Predicated region
    $region10: #{tpu_custom_call.1} parent=1 // pred_check
      _
    $region11: #{tpu_custom_call.1} parent=1 // pred_check_branch
      %16 = sbr.rel (0) target = $region13
    $region12: #{tpu_custom_call.1} parent=1 // pred_region
      _
    $region13: #{tpu_custom_call.1} parent=1 // pred_fallthru
      _
    // Predicated region
    $region14: #{tpu_custom_call.1} parent=1 // pred_check
      _
    $region15: #{tpu_custom_call.1} parent=1 // pred_check_branch
      %18 = sbr.rel (0) target = $region17
    $region16: #{tpu_custom_call.1} parent=1 // pred_region
      _
    $region17: #{tpu_custom_call.1} parent=1 // pred_fallthru
      _
    %v19 = vld [vmem:[%s0] sm:$0xff]
    %v20 = vld [vmem:[%s0 + $0x8] sm:$0xff]
    %v21 = vld [vmem:[%s1] sm:$0x3]
    %v22 = vld [vmem:[%s2] sm:$0xff]
    %v23 = vld [vmem:[%s2 + $0x8] sm:$0xff]
    %v24 = vld [vmem:[%s2 + $0x10] sm:$0xff]
    %v25 = vld [vmem:[%s2 + $0x18] sm:$0xff]
    %s26 = sld [smem:[#allocation2]]
    %vm27 = vcmask 261120
    %v29 = vsel %vm27, %v19, 0
    %v32 = vsel %vm27, %v20, 0
    %34 = vmatprep.subr.mxu0 0.0
    %35 = vmatpush1.msra.mxu0 %v22
    %36 = vmatprep.subr.mxu0 0.0
    %37 = vmatpush1.msra.mxu0 %v23
    %38 = vmatprep.subr.mxu0 0.0
    %39 = vmatpush1.msra.mxu0 %v24
    %40 = vmatprep.subr.mxu0 0.0
    %41 = vmatpush1.msra.mxu0 %v25
    %42 = vmatprep.subr.mxu0 0.0
    %43 = vmatpush1.msra.mxu0 0.0
    %44 = vmatprep.subr.mxu0 0.0
    %45 = vmatpush1.msra.mxu0 0.0
    %46 = vmatprep.subr.mxu0 0.0
    %47 = vmatpush1.msra.mxu0 0.0
    %48 = vmatprep.subr.mxu0 0.0
    %49 = vmatpush1.msra.mxu0 0.0
    %50 = vmatprep.subr.mxu0 0.0
    %51 = vmatpush1.msra.mxu0 0.0
    %52 = vmatprep.subr.mxu0 0.0
    %53 = vmatpush1.msra.mxu0 0.0
    %54 = vmatprep.subr.mxu0 0.0
    %55 = vmatpush1.msra.mxu0 0.0
    %56 = vmatprep.subr.mxu0 0.0
    %57 = vmatpush1.msra.mxu0 0.0
    %58 = vmatprep.subr.mxu0 0.0
    %59 = vmatpush1.msra.mxu0 0.0
    %60 = vmatprep.subr.mxu0 0.0
    %61 = vmatpush1.msra.mxu0 0.0
    %62 = vmatprep.subr.mxu0 0.0
    %63 = vmatpush1.msra.mxu0 0.0
    %64 = vmatprep.subr.mxu0 0.0
    %65 = vmatpush1.msra.mxu0 0.0
    %66 = vmatprep.subr.mxu0 0.0
    %67 = vmatpush1.msra.mxu0 0.0
    %68 = vmatprep.subr.mxu0 0.0
    %69 = vmatpush1.msra.mxu0 0.0
    %70 = vmatprep.subr.mxu0 0.0
    %71 = vmatpush1.msra.mxu0 0.0
    %72 = vmatprep.subr.mxu0 0.0
    %73 = vmatpush1.msra.mxu0 0.0
    %74 = vmatprep.subr.mxu0 0.0
    %75 = vmatpush1.msra.mxu0 0.0
    %76 = vmatprep.subr.mxu0 0.0
    %77 = vmatpush1.msra.mxu0 0.0
    %78 = vmatprep.subr.mxu0 0.0
    %79 = vmatpush1.msra.mxu0 0.0
    %80 = vmatprep.subr.mxu0 0.0
    %81 = vmatpush1.msra.mxu0 0.0
    %82 = vmatprep.subr.mxu0 0.0
    %83 = vmatpush1.msra.mxu0 0.0
    %84 = vmatprep.subr.mxu0 0.0
    %85 = vmatpush1.msra.mxu0 0.0
    %86 = vmatprep.subr.mxu0 0.0
    %87 = vmatpush1.msra.mxu0 0.0
    %88 = vmatprep.subr.mxu0 0.0
    %89 = vmatpush1.msra.mxu0 0.0
    %90 = vmatprep.subr.mxu0 0.0
    %91 = vmatpush1.msra.mxu0 0.0
    %92 = vmatprep.subr.mxu0 0.0
    %93 = vmatpush1.msra.mxu0 0.0
    %94 = vmatprep.subr.mxu0 0.0
    %95 = vmatpush1.msra.mxu0 0.0
    %96 = vmatprep.subr.mxu0 0.0
    %97 = vmatpush1.msra.mxu0 0.0
    %98 = vmatprep.mubr.f32.mxu0 0.0
    %99 = vmatmul.mubr.f32.gmra.mrb[0].mxu0 %v29
    %v100 = vpop.f32.mrb[0].mxu0
    %v101 = vadd.f32 0.0, %v100
    %v102 = vpop.f32.mrb[0].mxu0
    %103 = vmatprep.mubr.f32.mxu0 0.0
    %104 = vmatmul.mubr.f32.gmra.mrb[0].mxu0 %v32
    %v105 = vpop.f32.mrb[0].mxu0
    %v106 = vadd.f32 0.0, %v105
    %v107 = vpop.f32.mrb[0].mxu0
    %108 = vdwg.mxu0
    %v109 = vstv %s26
    %v110 = vadd.f32 %v101, %v109
    %v111 = vadd.f32 %v106, %v109
    %v113 = vlaneseq
    %v114 = vshrl.u32 %v113, 7
    %v115 = vsub.s32 0, %v114
    %v116 = vrot.slane %v21, %v115
    %118 = vbcast.lane.b32.xlu0 %v116, 256
    %v119 = vpop.permute.xlu0 %118
    %v120 = vlaneseq
    %v121 = vshrl.u32 %v120, 7
    %v122 = vsub.s32 1, %v121
    %v123 = vrot.slane %v21, %v122
    %125 = vbcast.lane.b32.xlu0 %v123, 256
    %v126 = vpop.permute.xlu0 %125
    %v129 = vmul.f32 %v110, %v119
    %v130 = vmul.f32 %v111, %v126
    %133 = vset.pattern.permute.xlu0 0
    %134 = vperm.xlu0 %133, %v129
    %v135 = vpop.permute.xlu0 %134
    %136 = vset.pattern.permute.xlu0 0
    %137 = vperm.xlu0 %136, %v130
    %v138 = vpop.permute.xlu0 %137
    %v139 = vlaneseq
    %v140 = vand.u32 %v139, 127
    %v141 = vlaneseq
    %v142 = vshrl.u32 %v141, 7
    %v143 = vsub.s32 %v140, %v142
    %v144 = vrot.slane %v135, %v143
    %v145 = vlaneseq
    %v146 = vshrl.u32 %v145, 7
    %v147 = vsub.s32 %v140, %v146
    %v148 = vrot.slane %v138, %v147
    %vm149 = vcmask 1041409
    %v150 = vsel %vm149, %v148, %v144
    %vm152 = vcmask 58368
    %v153 = vsel %vm152, %v150, -inf
    %154 = vmax.xlane.f32.xlu0 %v153
    %v155 = vpop.xlane.xlu0 %154
    %v157 = vlaneseq
    %v158 = vshrl.u32 %v157, 7
    %v159 = vsub.s32 0, %v158
    %v160 = vrot.slane %v155, %v159
    %v161 = vlaneseq
    %v162 = vshrl.u32 %v161, 7
    %v163 = vsub.s32 1, %v162
    %v164 = vrot.slane %v155, %v163
    %v167 = vsub.f32 %v129, %v160
    %v168 = vsub.f32 %v130, %v164
    %v169 = vmul.f32 %v167, 2.0
    %v170 = vmul.f32 %v168, 2.0
    %v171 = vmul.f32 %v169, 1.442695
    %v172 = vpow.pop %v171
    %v173 = vmul.f32 %v170, 1.442695
    %v174 = vpow.pop %v173
    %177 = vset.pattern.permute.xlu0 0
    %178 = vperm.xlu0 %177, %v172
    %v179 = vpop.permute.xlu0 %178
    %180 = vset.pattern.permute.xlu0 0
    %181 = vperm.xlu0 %180, %v174
    %v182 = vpop.permute.xlu0 %181
    %v183 = vlaneseq
    %v184 = vshrl.u32 %v183, 7
    %v185 = vsub.s32 %v140, %v184
    %v186 = vrot.slane %v179, %v185
    %v187 = vlaneseq
    %v188 = vshrl.u32 %v187, 7
    %v189 = vsub.s32 %v140, %v188
    %v190 = vrot.slane %v182, %v189
    %v191 = vsel %vm149, %v190, %v186
    %v193 = vsel %vm152, %v191, 0.0
    %194 = vadd.xlane.f32.xlu0 %v193
    %v195 = vpop.xlane.xlu0 %194
    %v197 = vlaneseq
    %v198 = vshrl.u32 %v197, 7
    %v199 = vsub.s32 0, %v198
    %v200 = vrot.slane %v195, %v199
    %v201 = vlaneseq
    %v202 = vshrl.u32 %v201, 7
    %v203 = vsub.s32 1, %v202
    %v204 = vrot.slane %v195, %v203
    %v207 = vrcp.pop %v200
    %v208 = vmul.f32 %v172, %v207
    %v209 = vrcp.pop %v204
    %v210 = vmul.f32 %v174, %v209
    %212 = vset.pattern.permute.xlu0 0
    %213 = vperm.xlu0 %212, %v208
    %v214 = vpop.permute.xlu0 %213
    %217 = vset.pattern.permute.xlu0 0
    %218 = vperm.xlu0 %217, %v210
    %v219 = vpop.permute.xlu0 %218
    %v221 = vmul.f32 %v19, %v214
    %v222 = vmul.f32 %v20, %v219
    %v223 = vsel %vm27, %v221, 0.0
    %v224 = vrot.slane %v223, 4
    %v225 = vadd.f32 %v223, %v224
    %v226 = vrot.slane %v225, 2
    %v227 = vadd.f32 %v225, %v226
    %v228 = vrot.slane %v227, 1
    %v229 = vadd.f32 %v227, %v228
    %v230 = vsel %vm27, %v222, 0.0
    %v231 = vrot.slane %v230, 4
    %v232 = vadd.f32 %v230, %v231
    %v233 = vrot.slane %v232, 2
    %v234 = vadd.f32 %v232, %v233
    %v235 = vrot.slane %v234, 1
    %v236 = vadd.f32 %v234, %v235
    %v239 = vsel %vm149, %v236, %v229
    %vm241 = vcmask 254976
    %242 = vst.msk [vmem:[#allocation3] sm:$0x3] %vm241, %v239
    // Predicated region
    $region18: #{tpu_custom_call.1} parent=1 // pred_check
      _
    $region19: #{tpu_custom_call.1} parent=1 // pred_check_branch
      %244 = sbr.rel (0) target = $region21
    $region20: #{tpu_custom_call.1} parent=1 // pred_region
      %s246 = ssub.s32 32, 32
      %247 = vsyncadd [#allocation4], %s246
      %s249 = sshll.u32 [#allocation3], 4
      %s250 = int_to_ptr.vmem [resolvable:$true] %s249
      %252 = dma.vmem_to_hbm [thread:$0]  %s250, 32, %s4, [#allocation4]
    $region21: #{tpu_custom_call.1} parent=1 // pred_fallthru
      _
    // Predicated region
    $region22: #{tpu_custom_call.1} parent=1 // pred_check
      _
    $region23: #{tpu_custom_call.1} parent=1 // pred_check_branch
      %254 = sbr.rel (0) target = $region25
    $region24: #{tpu_custom_call.1} parent=1 // pred_region
      %255 = dma.done [#allocation4], 32
    $region25: #{tpu_custom_call.1} parent=1 // pred_fallthru
      _
    %256 = vsyncpa [#allocation4], 1

</llo_original>
